<compile_context>
chip_gen: v5e
topology: v5e:2x2
jax: 0.10.0
libtpu: 0.0.40
codegen_flags: <defaults>
</compile_context>

<pallas_src>
import functools
import math

import jax
import jax.numpy as jnp
from jax.experimental import pallas as pl
from jax.experimental.pallas import tpu as pltpu


def _ln_row_kernel(x_ref, w_ref, b_ref, o_ref, *, eps, inv_c, use_scale,
                   use_bias):
    """g == 1 path: one logical row per kernel row, lane-axis reductions."""
    xf = x_ref[...].astype(jnp.float32)
    mean = jnp.sum(xf, axis=-1, keepdims=True) * jnp.float32(inv_c)
    msq = jnp.sum(xf * xf, axis=-1, keepdims=True) * jnp.float32(inv_c)
    var = msq - mean * mean                       # E[x^2] - mean^2 (f32 accum)
    inv = jax.lax.rsqrt(var + jnp.float32(eps))   # (T, 1)
    if use_scale:
        a = inv * w_ref[...].astype(jnp.float32)  # (T,1)*(1,C) -> (T,C)
    else:
        a = inv
    sh = -(mean * a)                              # b - mean*inv*w (bias below)
    if use_bias:
        sh = sh + b_ref[...].astype(jnp.float32)
    o_ref[...] = (xf * a + sh).astype(o_ref.dtype)   # single fused output pass


def _ln_packed_kernel(x_ref, m_ref, mtw_ref, b_ref, o_ref, *, eps, use_bias):
    """g > 1 path: g logical rows packed per kernel row (lane-dense gC).

    m_ref:   (gC, g) block-diagonal ones with 1/C folded in (f32, resident).
    mtw_ref: (g, gC) block-diagonal ones with the weight folded in (f32).
    Rows of different logical groups never mix (segmented reductions on MXU).
    """
    xf = x_ref[...].astype(jnp.float32)
    m = m_ref[...]
    mean = jnp.dot(xf, m, preferred_element_type=jnp.float32)        # (T, g)
    msq = jnp.dot(xf * xf, m, preferred_element_type=jnp.float32)    # (T, g)
    var = msq - mean * mean
    inv = jax.lax.rsqrt(var + jnp.float32(eps))                      # (T, g)
    mtw = mtw_ref[...]
    a = jnp.dot(inv, mtw, preferred_element_type=jnp.float32)        # inv*w
    sh = jnp.dot(-(mean * inv), mtw, preferred_element_type=jnp.float32)
    if use_bias:
        sh = sh + b_ref[...].astype(jnp.float32)
    o_ref[...] = (xf * a + sh).astype(o_ref.dtype)


def layernorm_general(x, weight=None, bias=None, *, eps=1e-5, scale=True,
                      use_bias=True, tile_rows=None,
                      target_block_bytes=4 * 1024 * 1024,
                      vmem_limit_bytes=48 * 1024 * 1024):
    """LayerNormGeneral forward (normalized_dim=(-1,), affine_shape=(C,))."""
    # TODO(synk): general normalized_dim tuples / non-1D affine_shape are not
    # implemented; this covers the standard channels-last (-1,) case.
    orig_shape = x.shape
    C = orig_shape[-1]
    x2d = x.reshape(-1, C)
    N = x2d.shape[0]
    dtype = x.dtype
    itemsize = jnp.dtype(dtype).itemsize

    # ---- lane packing: pick g so g*C is a multiple of 128 (lane-dense rows,
    # unmasked stores, no lane padding), capped at gC <= 512.
    g = 128 // math.gcd(C, 128)
    if g == 1 or g * C > 512 or N % g != 0:
        g = 1
    gC = g * C
    Ng = N // g
    xg = x2d.reshape(Ng, gC)   # contiguous: packed row r = logical rows r*g..r*g+g-1

    # ---- affine params (f32 rows, tiled g times along the packed lane axis).
    if scale and weight is not None:
        w = jnp.asarray(weight, dtype=jnp.float32).reshape(1, C)
    else:
        w = jnp.ones((1, C), jnp.float32)
    if use_bias and bias is not None:
        b = jnp.asarray(bias, dtype=jnp.float32).reshape(1, C)
    else:
        b = jnp.zeros((1, C), jnp.float32)
    w_row = jnp.tile(w, (1, g))           # (1, gC)
    b_row = jnp.tile(b, (1, g))           # (1, gC)

    # ---- tile sizing from the real VMEM footprint.
    sub = max(8, 32 // itemsize)          # sublane packing: 8 f32 / 16 bf16 / 32 i8
    if tile_rows is None:
        tr = max(sub, (target_block_bytes // (gC * itemsize)) // sub * sub)
    else:
        tr = max(sub, (tile_rows // sub) * sub)
    # footprint per row ~= 2x in dbuf + 2x out dbuf + ~3 f32 temporaries
    per_row_bytes = gC * (4 * itemsize + 3 * 4)
    budget = int(0.6 * vmem_limit_bytes)
    tr = min(tr, max(sub, (budget // per_row_bytes) // sub * sub))
    # never bigger than the (rounded-up) total row count
    rows_ceil = -(-Ng // sub) * sub
    tr = min(tr, rows_ceil)
    # keep >= 2 grid steps where possible (v7x has 2 TCs sharing the grid)
    half = -(-Ng // 2)
    half_rows = max(sub, -(-half // sub) * sub)
    tr = min(tr, half_rows)
    tile_rows = tr

    # Ragged last block: rows are independent; Pallas discards OOB writes, so
    # garbage stats in padded rows never touch valid outputs.
    grid = (pl.cdiv(Ng, tile_rows),)

    # Advisory only (understates MXU mask matmuls on the packed path).
    cost = pl.CostEstimate(
        flops=int(10 * N * C),
        transcendentals=int(N),
        bytes_accessed=int(2 * N * C * itemsize),
    )
    cparams = pltpu.CompilerParams(
        dimension_semantics=("parallel",),
        vmem_limit_bytes=vmem_limit_bytes,
    )

    if g > 1:
        # Block-diagonal reduce / broadcast matrices, built once on the host.
        seg = jnp.arange(gC, dtype=jnp.int32) // C          # (gC,)
        grp = jnp.arange(g, dtype=jnp.int32)                # (g,)
        M = (seg[:, None] == grp[None, :]).astype(jnp.float32) * jnp.float32(1.0 / C)
        MT = (grp[:, None] == seg[None, :]).astype(jnp.float32)
        MTW = MT * w_row if scale else MT                    # fold weight in

        kernel = functools.partial(_ln_packed_kernel, eps=eps, use_bias=use_bias)
        out = pl.pallas_call(
            kernel,
            out_shape=jax.ShapeDtypeStruct((Ng, gC), dtype),
            grid_spec=pltpu.PrefetchScalarGridSpec(
                num_scalar_prefetch=0,
                grid=grid,
                in_specs=[
                    pl.BlockSpec((tile_rows, gC), lambda i: (i, 0)),
                    pl.BlockSpec((gC, g), lambda i: (0, 0)),   # resident
                    pl.BlockSpec((g, gC), lambda i: (0, 0)),   # resident
                    pl.BlockSpec((1, gC), lambda i: (0, 0)),   # resident
                ],
                out_specs=pl.BlockSpec((tile_rows, gC), lambda i: (i, 0)),
            ),
            compiler_params=cparams,
            cost_estimate=cost,
        )(xg, M, MTW, b_row)
    else:
        kernel = functools.partial(_ln_row_kernel, eps=eps, inv_c=1.0 / C,
                                   use_scale=scale, use_bias=use_bias)
        out = pl.pallas_call(
            kernel,
            out_shape=jax.ShapeDtypeStruct((Ng, gC), dtype),
            grid_spec=pltpu.PrefetchScalarGridSpec(
                num_scalar_prefetch=0,
                grid=grid,
                in_specs=[
                    pl.BlockSpec((tile_rows, gC), lambda i: (i, 0)),
                    pl.BlockSpec((1, gC), lambda i: (0, 0)),   # resident
                    pl.BlockSpec((1, gC), lambda i: (0, 0)),   # resident
                ],
                out_specs=pl.BlockSpec((tile_rows, gC), lambda i: (i, 0)),
            ),
            compiler_params=cparams,
            cost_estimate=cost,
        )(xg, w_row, b_row)

    return out.reshape(orig_shape)


def layernorm_ref(x, weight, bias, eps=1e-5, scale=True, use_bias=True):
    c = x - jnp.mean(x, axis=-1, keepdims=True)
    s = jnp.mean(c * c, axis=-1, keepdims=True)
    y = c / jnp.sqrt(s + eps)
    if scale:
        y = y * weight
    if use_bias:
        y = y + bias
    return y


if __name__ == "__main__":
    key = jax.random.PRNGKey(0)
    k1, k2, k3 = jax.random.split(key, 3)

    # Case 1: small channels (C=32) -> packed path g=4, gC=128.
    B, H, W, C = 2, 16, 16, 32
    x = jax.random.normal(k1, (B, H, W, C), dtype=jnp.float32)
    weight = jax.random.normal(k1, (C,), dtype=jnp.float32) * 0.1 + 1.0
    bias = jax.random.normal(k2, (C,), dtype=jnp.float32) * 0.1
    out = jax.block_until_ready(layernorm_general(x, weight, bias, eps=1e-5))
    ref = layernorm_ref(x, weight, bias, eps=1e-5)
    assert out.shape == x.shape
    assert jnp.allclose(out, ref, atol=1e-5, rtol=1e-5)

    # Case 2: C=192 (not a multiple of 128) -> packed path g=2, gC=384, plus a
    # ragged final row block (no host-side padding anywhere).
    B2, H2, W2, C2 = 2, 7, 9, 192
    x2 = jax.random.normal(k2, (B2, H2, W2, C2), dtype=jnp.float32)
    w2 = jnp.ones((C2,), dtype=jnp.float32)
    b2 = jnp.zeros((C2,), dtype=jnp.float32)
    out2 = jax.block_until_ready(layernorm_general(x2, w2, b2, eps=1e-5))
    ref2 = layernorm_ref(x2, w2, b2, eps=1e-5)
    assert out2.shape == x2.shape
    assert jnp.allclose(out2, ref2, atol=1e-5, rtol=1e-5)

    # Case 3: C=100 -> packing capped out, g=1 fallback path + ragged block.
    x3 = jax.random.normal(k3, (3, 5, 100), dtype=jnp.float32)
    w3 = jax.random.normal(k3, (100,), dtype=jnp.float32) * 0.1 + 1.0
    b3 = jax.random.normal(k1, (100,), dtype=jnp.float32) * 0.1
    out3 = jax.block_until_ready(layernorm_general(x3, w3, b3, eps=1e-5))
    ref3 = layernorm_ref(x3, w3, b3, eps=1e-5)
    assert out3.shape == x3.shape
    assert jnp.allclose(out3, ref3, atol=1e-5, rtol=1e-5)

    # Case 4: scale only / bias disabled (flag path).
    out4 = jax.block_until_ready(
        layernorm_general(x, weight, None, eps=1e-5, scale=True, use_bias=False))
    ref4 = layernorm_ref(x, weight, None, eps=1e-5, scale=True, use_bias=False)
    assert jnp.allclose(out4, ref4, atol=1e-5, rtol=1e-5)

    print("KERNEL_OK")
</pallas_src>

<mosaic_0001>
module attributes {stable_mosaic.version = 11 : i64} {
  func.func @_ln_packed_kernel(%arg0: i32, %arg1: memref<64x128xf32, #tpu.memory_space<vmem>>, %arg2: memref<128x4xf32, #tpu.memory_space<vmem>>, %arg3: memref<4x128xf32, #tpu.memory_space<vmem>>, %arg4: memref<1x128xf32, #tpu.memory_space<vmem>>, %arg5: memref<64x128xf32, #tpu.memory_space<vmem>>) attributes {dimension_semantics = [#tpu.dimension_semantics<parallel>], iteration_bounds = array<i64: 2>, scalar_prefetch = 0 : i64, scratch_operands = 0 : i64, tpu.core_type = #tpu.core_type<tc>, window_params = [{transform_indices = @transform_0, window_bounds = array<i64: 64, 128>}, {pipeline_mode = #tpu.pipeline_mode<synchronous>, transform_indices = @transform_1, window_bounds = array<i64: 128, 4>}, {pipeline_mode = #tpu.pipeline_mode<synchronous>, transform_indices = @transform_2, window_bounds = array<i64: 4, 128>}, {pipeline_mode = #tpu.pipeline_mode<synchronous>, transform_indices = @transform_3, window_bounds = array<i64: 1, 128>}, {transform_indices = @transform_4, window_bounds = array<i64: 64, 128>}]} {
    %c0 = arith.constant 0 : index
    %c0_0 = arith.constant 0 : index
    %0 = vector.load %arg1[%c0, %c0_0] : memref<64x128xf32, #tpu.memory_space<vmem>>, vector<64x128xf32>
    %c0_1 = arith.constant 0 : index
    %c0_2 = arith.constant 0 : index
    %1 = vector.load %arg2[%c0_1, %c0_2] : memref<128x4xf32, #tpu.memory_space<vmem>>, vector<128x4xf32>
    %cst = arith.constant dense<0.000000e+00> : vector<64x4xf32>
    %2 = tpu.matmul %0, %1, %cst {dimension_numbers = #tpu.dot_dimension_numbers<[1], [0], [0], [1], [0, 0, 1, 1], [], []>} : vector<64x128xf32>, vector<128x4xf32>, vector<64x4xf32> -> vector<64x4xf32>
    %3 = arith.mulf %0, %0 : vector<64x128xf32>
    %cst_3 = arith.constant dense<0.000000e+00> : vector<64x4xf32>
    %4 = tpu.matmul %3, %1, %cst_3 {dimension_numbers = #tpu.dot_dimension_numbers<[1], [0], [0], [1], [0, 0, 1, 1], [], []>} : vector<64x128xf32>, vector<128x4xf32>, vector<64x4xf32> -> vector<64x4xf32>
    %5 = arith.mulf %2, %2 : vector<64x4xf32>
    %6 = arith.subf %4, %5 : vector<64x4xf32>
    %cst_4 = arith.constant 9.99999974E-6 : f32
    %7 = vector.broadcast %cst_4 : f32 to vector<64x4xf32>
    %8 = arith.addf %6, %7 : vector<64x4xf32>
    %9 = math.rsqrt %8 : vector<64x4xf32>
    %c0_5 = arith.constant 0 : index
    %c0_6 = arith.constant 0 : index
    %10 = vector.load %arg3[%c0_5, %c0_6] : memref<4x128xf32, #tpu.memory_space<vmem>>, vector<4x128xf32>
    %cst_7 = arith.constant dense<0.000000e+00> : vector<64x128xf32>
    %11 = tpu.matmul %9, %10, %cst_7 {dimension_numbers = #tpu.dot_dimension_numbers<[1], [0], [0], [1], [0, 0, 1, 1], [], []>} : vector<64x4xf32>, vector<4x128xf32>, vector<64x128xf32> -> vector<64x128xf32>
    %12 = arith.mulf %2, %9 : vector<64x4xf32>
    %cst_8 = arith.constant 0.000000e+00 : f32
    %13 = vector.broadcast %cst_8 : f32 to vector<64x4xf32>
    %14 = arith.subf %13, %12 : vector<64x4xf32>
    %cst_9 = arith.constant dense<0.000000e+00> : vector<64x128xf32>
    %15 = tpu.matmul %14, %10, %cst_9 {dimension_numbers = #tpu.dot_dimension_numbers<[1], [0], [0], [1], [0, 0, 1, 1], [], []>} : vector<64x4xf32>, vector<4x128xf32>, vector<64x128xf32> -> vector<64x128xf32>
    %c0_10 = arith.constant 0 : index
    %c0_11 = arith.constant 0 : index
    %16 = vector.load %arg4[%c0_10, %c0_11] : memref<1x128xf32, #tpu.memory_space<vmem>>, vector<1x128xf32>
    %17 = vector.broadcast %16 : vector<1x128xf32> to vector<64x128xf32>
    %18 = arith.addf %15, %17 : vector<64x128xf32>
    %19 = arith.mulf %0, %11 : vector<64x128xf32>
    %20 = arith.addf %19, %18 : vector<64x128xf32>
    %c0_12 = arith.constant 0 : index
    %c0_13 = arith.constant 0 : index
    %21 = vector.load %arg5[%c0_12, %c0_13] : memref<64x128xf32, #tpu.memory_space<vmem>>, vector<64x128xf32>
    tpu.vector_store %arg5[%c0_12, %c0_13], %20 {strides = array<i32>} : memref<64x128xf32, #tpu.memory_space<vmem>>, vector<64x128xf32>,
    return
  }
  func.func @transform_0(%arg0: i32) -> (i32, i32) {
    %c0_i32 = arith.constant 0 : i32
    %c0_i32_0 = arith.constant 0 : i32
    return %arg0, %c0_i32 : i32, i32
  }
  func.func @transform_1(%arg0: i32) -> (i32, i32) {
    %c0_i32 = arith.constant 0 : i32
    %c0_i32_0 = arith.constant 0 : i32
    %c0_i32_1 = arith.constant 0 : i32
    return %c0_i32, %c0_i32_0 : i32, i32
  }
  func.func @transform_2(%arg0: i32) -> (i32, i32) {
    %c0_i32 = arith.constant 0 : i32
    %c0_i32_0 = arith.constant 0 : i32
    %c0_i32_1 = arith.constant 0 : i32
    return %c0_i32, %c0_i32_0 : i32, i32
  }
  func.func @transform_3(%arg0: i32) -> (i32, i32) {
    %c0_i32 = arith.constant 0 : i32
    %c0_i32_0 = arith.constant 0 : i32
    %c0_i32_1 = arith.constant 0 : i32
    return %c0_i32, %c0_i32_0 : i32, i32
  }
  func.func @transform_4(%arg0: i32) -> (i32, i32) {
    %c0_i32 = arith.constant 0 : i32
    %c0_i32_0 = arith.constant 0 : i32
    return %arg0, %c0_i32 : i32, i32
  }
}

</mosaic_0001>

<llo_original>
// kernel: tpu_custom_call.1
$region0: #{tpu_custom_call.1}
  #allocation0 [shape = 'u32[]', space=smem, size = 0x4, offset = 0x4, fixed_abs, tag = 'smem constant byte address 0x4 - core index']
  #allocation1 [shape = 'u32[72,128]{1,0:T(1,128)}', space=vmem, size = 0x9000, scoped, tag = 'internal scratch']
  %s0 = inlined_call_operand.vmem [shape: f32[128,128], index: 0, kind: input, shape index: {}]
  %s1 = inlined_call_operand.vmem [shape: f32[128,4], index: 1, kind: input, shape index: {}]
  %s2 = inlined_call_operand.vmem [shape: f32[4,128], index: 2, kind: input, shape index: {}]
  %s3 = inlined_call_operand.vmem [shape: f32[1,128], index: 3, kind: input, shape index: {}]
  %s4 = inlined_call_operand.hbm [shape: f32[128,128], index: 4, kind: output, shape index: {}]
  %s5 = sld [smem:[#allocation0]]
  $region49: #{tpu_custom_call.1} parent=0
    _
  %s7 = ssub.s32 1, %s5
  %s8 = scalar_select 0, %s7, %s5
  $region1: #{tpu_custom_call.1} parent=0
    #allocation2 [shape = 'u8[65536]{0}', space=vmem, size = 0x10000, scoped, tag = 'output window, operand 0']
    #allocation3 [shape = 's32[2]{0}', space=sflag, size = 0x8, scoped, tag = 'scoped memory for tpu_custom_call.1']
    %9 = vsyncpa [#allocation3], 0
    %s10 = scalar_lea.sflag [#allocation3], 1
    %11 = vsyncpa %s10, 0
    loop: start=0, step=1, limit=4
    $region2: #{tpu_custom_call.1} parent=1 // loop_pre_header
      _
    $region3: #{tpu_custom_call.1} parent=1 // loop_header
      %s13 = sphi 0, %s17
      %p14 = scmp.ge.s32.totalorder %s13, 4
      %s23 = sphi 0, %s25
      %s26 = sphi 0, %s23
      %s27 = sphi 0, %s26
      %s43 = sphi 0, %s27
      %s47 = sphi 0, %s47
      %s49 = sphi 0, %s47
      %s50 = sphi 0, %s49
      %s64 = sphi 0, %s50
      %s68 = sphi 0, %s68
      %s70 = sphi 0, %s68
      %s71 = sphi 0, %s70
      %s85 = sphi 0, %s71
      %s89 = sphi 0, %s89
      %s91 = sphi 0, %s89
      %s92 = sphi 0, %s91
      %s106 = sphi 0, %s92
      %s112 = sphi 0, %s114
      %s115 = sphi 0, %s112
      %s116 = sphi 0, %s115
      %s132 = sphi 0, %s116
    $region4: #{tpu_custom_call.1} parent=1 // loop_header_branch
      %16 = sbr.rel (%p14) target = $region8
    $region5: #{tpu_custom_call.1} parent=1 // loop_body
      %s18 = ssub.s32 %s13, 1
      %s19 = ssub.s32 %s13, 2
      %s20 = sadd.s32 %s13, 1
      %s21 = ssub.s32 %s13, %s20
      %p22 = scmp.eq.s32.totalorder %s21, 0
      %s24 = sadd.s32 %s23, 1
      %s25 = scalar_select %p22, %s23, %s24
      %p28 = pneg %p22
      %p29 = scmp.eq.s32.totalorder %s13, 1
      %p30 = por %p28, %p29
      %p31 = scmp.ne.s32.totalorder %s23, %s26
      %p32 = scmp.eq.s32.totalorder %s13, 0
      %p33 = por %p31, %p32
      %p34 = scmp.ne.s32.totalorder %s23, %s26
      %p35 = scmp.eq.s32.totalorder %s18, 1
      %p36 = por %p34, %p35
      %p37 = scmp.ne.s32.totalorder %s26, %s27
      %p38 = scmp.eq.s32.totalorder %s18, 0
      %p39 = por %p37, %p38
      %p40 = scmp.ne.s32.totalorder %s26, %s27
      %p41 = scmp.eq.s32.totalorder %s19, 1
      %p42 = por %p40, %p41
      %p44 = scmp.ne.s32.totalorder %s27, %s43
      %p45 = scmp.eq.s32.totalorder %s19, 0
      %p46 = por %p44, %p45
      %s48 = sadd.s32 %s47, 1
      %p51 = scmp.eq.s32.totalorder %s13, 1
      %p52 = scmp.ne.s32.totalorder %s47, %s49
      %p53 = scmp.eq.s32.totalorder %s13, 0
      %p54 = por %p52, %p53
      %p55 = scmp.ne.s32.totalorder %s47, %s49
      %p56 = scmp.eq.s32.totalorder %s18, 1
      %p57 = por %p55, %p56
      %p58 = scmp.ne.s32.totalorder %s49, %s50
      %p59 = scmp.eq.s32.totalorder %s18, 0
      %p60 = por %p58, %p59
      %p61 = scmp.ne.s32.totalorder %s49, %s50
      %p62 = scmp.eq.s32.totalorder %s19, 1
      %p63 = por %p61, %p62
      %p65 = scmp.ne.s32.totalorder %s50, %s64
      %p66 = scmp.eq.s32.totalorder %s19, 0
      %p67 = por %p65, %p66
      %s69 = sadd.s32 %s68, 1
      %p72 = scmp.eq.s32.totalorder %s13, 1
      %p73 = scmp.ne.s32.totalorder %s68, %s70
      %p74 = scmp.eq.s32.totalorder %s13, 0
      %p75 = por %p73, %p74
      %p76 = scmp.ne.s32.totalorder %s68, %s70
      %p77 = scmp.eq.s32.totalorder %s18, 1
      %p78 = por %p76, %p77
      %p79 = scmp.ne.s32.totalorder %s70, %s71
      %p80 = scmp.eq.s32.totalorder %s18, 0
      %p81 = por %p79, %p80
      %p82 = scmp.ne.s32.totalorder %s70, %s71
      %p83 = scmp.eq.s32.totalorder %s19, 1
      %p84 = por %p82, %p83
      %p86 = scmp.ne.s32.totalorder %s71, %s85
      %p87 = scmp.eq.s32.totalorder %s19, 0
      %p88 = por %p86, %p87
      %s90 = sadd.s32 %s89, 1
      %p93 = scmp.eq.s32.totalorder %s13, 1
      %p94 = scmp.ne.s32.totalorder %s89, %s91
      %p95 = scmp.eq.s32.totalorder %s13, 0
      %p96 = por %p94, %p95
      %p97 = scmp.ne.s32.totalorder %s89, %s91
      %p98 = scmp.eq.s32.totalorder %s18, 1
      %p99 = por %p97, %p98
      %p100 = scmp.ne.s32.totalorder %s91, %s92
      %p101 = scmp.eq.s32.totalorder %s18, 0
      %p102 = por %p100, %p101
      %p103 = scmp.ne.s32.totalorder %s91, %s92
      %p104 = scmp.eq.s32.totalorder %s19, 1
      %p105 = por %p103, %p104
      %p107 = scmp.ne.s32.totalorder %s92, %s106
      %p108 = scmp.eq.s32.totalorder %s19, 0
      %p109 = por %p107, %p108
      %s110 = ssub.s32 %s13, %s20
      %p111 = scmp.eq.s32.totalorder %s110, 0
      %s113 = sadd.s32 %s112, 1
      %s114 = scalar_select %p111, %s112, %s113
      %p117 = pneg %p111
      %p118 = scmp.eq.s32.totalorder %s13, 1
      %p119 = por %p117, %p118
      %p120 = scmp.ne.s32.totalorder %s112, %s115
      %p121 = scmp.eq.s32.totalorder %s13, 0
      %p122 = por %p120, %p121
      %p123 = scmp.ne.s32.totalorder %s112, %s115
      %p124 = scmp.eq.s32.totalorder %s18, 1
      %p125 = por %p123, %p124
      %p126 = scmp.ne.s32.totalorder %s115, %s116
      %p127 = scmp.eq.s32.totalorder %s18, 0
      %p128 = por %p126, %p127
      %p129 = scmp.ne.s32.totalorder %s115, %s116
      %p130 = scmp.eq.s32.totalorder %s19, 1
      %p131 = por %p129, %p130
      %p133 = scmp.ne.s32.totalorder %s116, %s132
      %p134 = scmp.eq.s32.totalorder %s19, 0
      %p135 = por %p133, %p134
      %p136 = scmp.le.s32.totalorder 1, %s13
      %p137 = scmp.lt.s32.totalorder %s13, 3
      %p138 = pnand %p136, %p137
      %p139 = pneg %p138
      // Predicated region
      $region9: #{tpu_custom_call.1} parent=5 // pred_check
        _
      $region10: #{tpu_custom_call.1} parent=5 // pred_check_branch
        %141 = sbr.rel (%p138) target = $region12
      $region11: #{tpu_custom_call.1} parent=5 // pred_region
        %s142 = ssub.s32 %s13, 1
        // Predicated region
        $region13: #{tpu_custom_call.1} parent=11 // pred_check
          %p143 = pneg %p60
        $region14: #{tpu_custom_call.1} parent=11 // pred_check_branch
          %145 = sbr.rel (%p143) target = $region16
        $region15: #{tpu_custom_call.1} parent=11 // pred_region
          _
        $region16: #{tpu_custom_call.1} parent=11 // pred_fallthru
          _
        // Predicated region
        $region17: #{tpu_custom_call.1} parent=11 // pred_check
          %p146 = pneg %p81
        $region18: #{tpu_custom_call.1} parent=11 // pred_check_branch
          %148 = sbr.rel (%p146) target = $region20
        $region19: #{tpu_custom_call.1} parent=11 // pred_region
          _
        $region20: #{tpu_custom_call.1} parent=11 // pred_fallthru
          _
        // Predicated region
        $region21: #{tpu_custom_call.1} parent=11 // pred_check
          %p149 = pneg %p102
        $region22: #{tpu_custom_call.1} parent=11 // pred_check_branch
          %151 = sbr.rel (%p149) target = $region24
        $region23: #{tpu_custom_call.1} parent=11 // pred_region
          _
        $region24: #{tpu_custom_call.1} parent=11 // pred_fallthru
          _
      $region12: #{tpu_custom_call.1} parent=5 // pred_fallthru
        _
      %p152 = scmp.lt.s32.totalorder %s13, 2
      // Predicated region
      $region25: #{tpu_custom_call.1} parent=5 // pred_check
        %p153 = pneg %p152
      $region26: #{tpu_custom_call.1} parent=5 // pred_check_branch
        %155 = sbr.rel (%p153) target = $region28
      $region27: #{tpu_custom_call.1} parent=5 // pred_region
        // Predicated region
        $region29: #{tpu_custom_call.1} parent=27 // pred_check
          %p156 = pneg %p33
        $region30: #{tpu_custom_call.1} parent=27 // pred_check_branch
          %158 = sbr.rel (%p156) target = $region32
        $region31: #{tpu_custom_call.1} parent=27 // pred_region
          %s159 = smul.u32 8, %s13
          %p160 = scmp.lt.s32.totalorder %s159, 15
          %s161 = scalar_select %p160, %s159, 15
          %s162 = smul.addr %s161, 8
          %s163 = scalar_lea.vmem %s0, %s162
          %s164 = smul.u32 8, %s13
        $region32: #{tpu_custom_call.1} parent=27 // pred_fallthru
          _
      $region28: #{tpu_custom_call.1} parent=5 // pred_fallthru
        _
      %p165 = scmp.le.s32.totalorder 1, %s13
      %p166 = scmp.lt.s32.totalorder %s13, 3
      %p167 = pnand %p165, %p166
      %p168 = pneg %p167
      // Predicated region
      $region33: #{tpu_custom_call.1} parent=5 // pred_check
        _
      $region34: #{tpu_custom_call.1} parent=5 // pred_check_branch
        %170 = sbr.rel (%p167) target = $region36
      $region35: #{tpu_custom_call.1} parent=5 // pred_region
        %s171 = ssub.s32 %s13, 1
        %s172 = smul.u32 8, %s18
        %p173 = scmp.lt.s32.totalorder %s172, 15
        %s174 = scalar_select %p173, %s172, 15
        %s175 = smul.addr %s174, 8
        %s176 = scalar_lea.vmem %s0, %s175
        %p177 = pneg %p39
        %p178 = pneg %p36
        %p179 = pneg %p60
        %p180 = pneg %p57
        %p181 = pneg %p81
        %p182 = pneg %p78
        %p183 = pneg %p102
        %p184 = pneg %p99
        %p185 = pneg %p128
        %p186 = pneg %p125
        %s187 = sand.u32 %s115, 1
        %s188 = scalar_lea.sflag [#allocation3], %s187
        %s189 = sand.u32 %s115, 1
        %s190 = smul.addr %s189, 64
        %s191 = scalar_lea.vmem [#allocation2], %s190
        %s192 = smul.u32 8, %s18
        %p193 = scmp.lt.s32.totalorder %s192, 15
        %s194 = scalar_select %p193, %s192, 15
        %s195 = smul.addr %s194, 8
        %s196 = scalar_lea.vmem %s0, %s195
        %s197 = smul.u32 8, %s18
        %s198 = smul.u32 8, %s18
        %v199 = vld [vmem:[%s196] sm:$0xff]
        %v200 = vld [vmem:[%s196 + $0x8] sm:$0xff]
        %v201 = vld [vmem:[%s196 + $0x10] sm:$0xff]
        %v202 = vld [vmem:[%s196 + $0x18] sm:$0xff]
        %v203 = vld [vmem:[%s196 + $0x20] sm:$0xff]
        %v204 = vld [vmem:[%s196 + $0x28] sm:$0xff]
        %v205 = vld [vmem:[%s196 + $0x30] sm:$0xff]
        %v206 = vld [vmem:[%s196 + $0x38] sm:$0xff]
        %v207 = vld [vmem:[%s1] sm:$0xff]
        %v208 = vld [vmem:[%s1 + $0x8] sm:$0xff]
        %v209 = vld [vmem:[%s1 + $0x10] sm:$0xff]
        %v210 = vld [vmem:[%s1 + $0x18] sm:$0xff]
        %v211 = vld [vmem:[%s1 + $0x20] sm:$0xff]
        %v212 = vld [vmem:[%s1 + $0x28] sm:$0xff]
        %v213 = vld [vmem:[%s1 + $0x30] sm:$0xff]
        %v214 = vld [vmem:[%s1 + $0x38] sm:$0xff]
        %v215 = vld [vmem:[%s1 + $0x40] sm:$0xff]
        %v216 = vld [vmem:[%s1 + $0x48] sm:$0xff]
        %v217 = vld [vmem:[%s1 + $0x50] sm:$0xff]
        %v218 = vld [vmem:[%s1 + $0x58] sm:$0xff]
        %v219 = vld [vmem:[%s1 + $0x60] sm:$0xff]
        %v220 = vld [vmem:[%s1 + $0x68] sm:$0xff]
        %v221 = vld [vmem:[%s1 + $0x70] sm:$0xff]
        %v222 = vld [vmem:[%s1 + $0x78] sm:$0xff]
        %223 = vmatpush.msra.mxu0 %v222
        %224 = vmatpush.msra.mxu0 %v221
        %225 = vmatpush.msra.mxu0 %v220
        %226 = vmatpush.msra.mxu0 %v219
        %227 = vmatpush.msra.mxu0 %v218
        %228 = vmatpush.msra.mxu0 %v217
        %229 = vmatpush.msra.mxu0 %v216
        %230 = vmatpush.msra.mxu0 %v215
        %231 = vmatpush.msra.mxu0 %v214
        %232 = vmatpush.msra.mxu0 %v213
        %233 = vmatpush.msra.mxu0 %v212
        %234 = vmatpush.msra.mxu0 %v211
        %235 = vmatpush.msra.mxu0 %v210
        %236 = vmatpush.msra.mxu0 %v209
        %237 = vmatpush.msra.mxu0 %v208
        %238 = vmatpush.msra.mxu0 %v207
        %239 = vmatmul.f32.gmra.mxu0 %v199
        %v240 = vpop.f32.mrf.mxu0
        %v241 = vadd.f32 0.0, %v240
        %242 = vmatmul.f32.gmra.mxu0 %v200
        %v243 = vpop.f32.mrf.mxu0
        %v244 = vadd.f32 0.0, %v243
        %245 = vmatmul.f32.gmra.mxu0 %v201
        %v246 = vpop.f32.mrf.mxu0
        %v247 = vadd.f32 0.0, %v246
        %248 = vmatmul.f32.gmra.mxu0 %v202
        %v249 = vpop.f32.mrf.mxu0
        %v250 = vadd.f32 0.0, %v249
        %251 = vmatmul.f32.gmra.mxu0 %v203
        %v252 = vpop.f32.mrf.mxu0
        %v253 = vadd.f32 0.0, %v252
        %254 = vmatmul.f32.gmra.mxu0 %v204
        %v255 = vpop.f32.mrf.mxu0
        %v256 = vadd.f32 0.0, %v255
        %257 = vmatmul.f32.gmra.mxu0 %v205
        %v258 = vpop.f32.mrf.mxu0
        %v259 = vadd.f32 0.0, %v258
        %260 = vmatmul.f32.gmra.mxu0 %v206
        %v261 = vpop.f32.mrf.mxu0
        %v262 = vadd.f32 0.0, %v261
        %263 = vdwg.mxu0
        %v264 = vmul.f32 %v199, %v199
        %v265 = vmul.f32 %v200, %v200
        %v266 = vmul.f32 %v201, %v201
        %v267 = vmul.f32 %v202, %v202
        %v268 = vmul.f32 %v203, %v203
        %v269 = vmul.f32 %v204, %v204
        %v270 = vmul.f32 %v205, %v205
        %v271 = vmul.f32 %v206, %v206
        %272 = vmatpush.msra.mxu0 %v222
        %273 = vmatpush.msra.mxu0 %v221
        %274 = vmatpush.msra.mxu0 %v220
        %275 = vmatpush.msra.mxu0 %v219
        %276 = vmatpush.msra.mxu0 %v218
        %277 = vmatpush.msra.mxu0 %v217
        %278 = vmatpush.msra.mxu0 %v216
        %279 = vmatpush.msra.mxu0 %v215
        %280 = vmatpush.msra.mxu0 %v214
        %281 = vmatpush.msra.mxu0 %v213
        %282 = vmatpush.msra.mxu0 %v212
        %283 = vmatpush.msra.mxu0 %v211
        %284 = vmatpush.msra.mxu0 %v210
        %285 = vmatpush.msra.mxu0 %v209
        %286 = vmatpush.msra.mxu0 %v208
        %287 = vmatpush.msra.mxu0 %v207
        %288 = vmatmul.f32.gmra.mxu0 %v264
        %v289 = vpop.f32.mrf.mxu0
        %v290 = vadd.f32 0.0, %v289
        %291 = vmatmul.f32.gmra.mxu0 %v265
        %v292 = vpop.f32.mrf.mxu0
        %v293 = vadd.f32 0.0, %v292
        %294 = vmatmul.f32.gmra.mxu0 %v266
        %v295 = vpop.f32.mrf.mxu0
        %v296 = vadd.f32 0.0, %v295
        %297 = vmatmul.f32.gmra.mxu0 %v267
        %v298 = vpop.f32.mrf.mxu0
        %v299 = vadd.f32 0.0, %v298
        %300 = vmatmul.f32.gmra.mxu0 %v268
        %v301 = vpop.f32.mrf.mxu0
        %v302 = vadd.f32 0.0, %v301
        %303 = vmatmul.f32.gmra.mxu0 %v269
        %v304 = vpop.f32.mrf.mxu0
        %v305 = vadd.f32 0.0, %v304
        %306 = vmatmul.f32.gmra.mxu0 %v270
        %v307 = vpop.f32.mrf.mxu0
        %v308 = vadd.f32 0.0, %v307
        %309 = vmatmul.f32.gmra.mxu0 %v271
        %v310 = vpop.f32.mrf.mxu0
        %v311 = vadd.f32 0.0, %v310
        %312 = vdwg.mxu0
        %v313 = vmul.f32 %v241, %v241
        %v314 = vmul.f32 %v244, %v244
        %v315 = vmul.f32 %v247, %v247
        %v316 = vmul.f32 %v250, %v250
        %v317 = vmul.f32 %v253, %v253
        %v318 = vmul.f32 %v256, %v256
        %v319 = vmul.f32 %v259, %v259
        %v320 = vmul.f32 %v262, %v262
        %v321 = vsub.f32 %v290, %v313
        %v322 = vsub.f32 %v293, %v314
        %v323 = vsub.f32 %v296, %v315
        %v324 = vsub.f32 %v299, %v316
        %v325 = vsub.f32 %v302, %v317
        %v326 = vsub.f32 %v305, %v318
        %v327 = vsub.f32 %v308, %v319
        %v328 = vsub.f32 %v311, %v320
        %v329 = vadd.f32 %v321, 1e-05
        %v330 = vadd.f32 %v322, 1e-05
        %v331 = vadd.f32 %v323, 1e-05
        %v332 = vadd.f32 %v324, 1e-05
        %v333 = vadd.f32 %v325, 1e-05
        %v334 = vadd.f32 %v326, 1e-05
        %v335 = vadd.f32 %v327, 1e-05
        %v336 = vadd.f32 %v328, 1e-05
        %v337 = vrsqrt.pop %v329
        %v338 = vmul.f32 %v337, %v329
        %v339 = vmul.f32 %v338, %v337
        %v340 = vmul.f32 0.5, %v339
        %v341 = vsub.f32 1.5, %v340
        %v342 = vmul.f32 %v337, %v341
        %vm343 = vweird.f32 %v329
        %vm344 = vweird.f32 %v337
        %vm345 = vmor %vm343, %vm344
        %v346 = vsel %vm345, %v337, %v342
        %v347 = vrsqrt.pop %v330
        %v348 = vmul.f32 %v347, %v330
        %v349 = vmul.f32 %v348, %v347
        %v350 = vmul.f32 0.5, %v349
        %v351 = vsub.f32 1.5, %v350
        %v352 = vmul.f32 %v347, %v351
        %vm353 = vweird.f32 %v330
        %vm354 = vweird.f32 %v347
        %vm355 = vmor %vm353, %vm354
        %v356 = vsel %vm355, %v347, %v352
        %v357 = vrsqrt.pop %v331
        %v358 = vmul.f32 %v357, %v331
        %v359 = vmul.f32 %v358, %v357
        %v360 = vmul.f32 0.5, %v359
        %v361 = vsub.f32 1.5, %v360
        %v362 = vmul.f32 %v357, %v361
        %vm363 = vweird.f32 %v331
        %vm364 = vweird.f32 %v357
        %vm365 = vmor %vm363, %vm364
        %v366 = vsel %vm365, %v357, %v362
        %v367 = vrsqrt.pop %v332
        %v368 = vmul.f32 %v367, %v332
        %v369 = vmul.f32 %v368, %v367
        %v370 = vmul.f32 0.5, %v369
        %v371 = vsub.f32 1.5, %v370
        %v372 = vmul.f32 %v367, %v371
        %vm373 = vweird.f32 %v332
        %vm374 = vweird.f32 %v367
        %vm375 = vmor %vm373, %vm374
        %v376 = vsel %vm375, %v367, %v372
        %v377 = vrsqrt.pop %v333
        %v378 = vmul.f32 %v377, %v333
        %v379 = vmul.f32 %v378, %v377
        %v380 = vmul.f32 0.5, %v379
        %v381 = vsub.f32 1.5, %v380
        %v382 = vmul.f32 %v377, %v381
        %vm383 = vweird.f32 %v333
        %vm384 = vweird.f32 %v377
        %vm385 = vmor %vm383, %vm384
        %v386 = vsel %vm385, %v377, %v382
        %v387 = vrsqrt.pop %v334
        %v388 = vmul.f32 %v387, %v334
        %v389 = vmul.f32 %v388, %v387
        %v390 = vmul.f32 0.5, %v389
        %v391 = vsub.f32 1.5, %v390
        %v392 = vmul.f32 %v387, %v391
        %vm393 = vweird.f32 %v334
        %vm394 = vweird.f32 %v387
        %vm395 = vmor %vm393, %vm394
        %v396 = vsel %vm395, %v387, %v392
        %v397 = vrsqrt.pop %v335
        %v398 = vmul.f32 %v397, %v335
        %v399 = vmul.f32 %v398, %v397
        %v400 = vmul.f32 0.5, %v399
        %v401 = vsub.f32 1.5, %v400
        %v402 = vmul.f32 %v397, %v401
        %vm403 = vweird.f32 %v335
        %vm404 = vweird.f32 %v397
        %vm405 = vmor %vm403, %vm404
        %v406 = vsel %vm405, %v397, %v402
        %v407 = vrsqrt.pop %v336
        %v408 = vmul.f32 %v407, %v336
        %v409 = vmul.f32 %v408, %v407
        %v410 = vmul.f32 0.5, %v409
        %v411 = vsub.f32 1.5, %v410
        %v412 = vmul.f32 %v407, %v411
        %vm413 = vweird.f32 %v336
        %vm414 = vweird.f32 %v407
        %vm415 = vmor %vm413, %vm414
        %v416 = vsel %vm415, %v407, %v412
        %v417 = vld [vmem:[%s2] sm:$0xf]
        %vm418 = vcmask 31744
        %v420 = vsel %vm418, %v346, 0
        %v423 = vsel %vm418, %v356, 0
        %v426 = vsel %vm418, %v366, 0
        %v429 = vsel %vm418, %v376, 0
        %v432 = vsel %vm418, %v386, 0
        %v435 = vsel %vm418, %v396, 0
        %v438 = vsel %vm418, %v406, 0
        %v441 = vsel %vm418, %v416, 0
        %vm443 = vcmask 1043456
        %v445 = vsel %vm443, %v417, 0
        %447 = vmatpush.msra.mxu0 0.0
        %448 = vmatpush.msra.mxu0 0.0
        %449 = vmatpush.msra.mxu0 0.0
        %450 = vmatpush.msra.mxu0 0.0
        %451 = vmatpush.msra.mxu0 0.0
        %452 = vmatpush.msra.mxu0 0.0
        %453 = vmatpush.msra.mxu0 0.0
        %454 = vmatpush.msra.mxu0 0.0
        %455 = vmatpush.msra.mxu0 0.0
        %456 = vmatpush.msra.mxu0 0.0
        %457 = vmatpush.msra.mxu0 0.0
        %458 = vmatpush.msra.mxu0 0.0
        %459 = vmatpush.msra.mxu0 0.0
        %460 = vmatpush.msra.mxu0 0.0
        %461 = vmatpush.msra.mxu0 0.0
        %462 = vmatpush.msra.mxu0 %v445
        %463 = vmatmul.f32.gmra.mxu0 %v420
        %v464 = vpop.f32.mrf.mxu0
        %v465 = vadd.f32 0.0, %v464
        %466 = vmatmul.f32.gmra.mxu0 %v423
        %v467 = vpop.f32.mrf.mxu0
        %v468 = vadd.f32 0.0, %v467
        %469 = vmatmul.f32.gmra.mxu0 %v426
        %v470 = vpop.f32.mrf.mxu0
        %v471 = vadd.f32 0.0, %v470
        %472 = vmatmul.f32.gmra.mxu0 %v429
        %v473 = vpop.f32.mrf.mxu0
        %v474 = vadd.f32 0.0, %v473
        %475 = vmatmul.f32.gmra.mxu0 %v432
        %v476 = vpop.f32.mrf.mxu0
        %v477 = vadd.f32 0.0, %v476
        %478 = vmatmul.f32.gmra.mxu0 %v435
        %v479 = vpop.f32.mrf.mxu0
        %v480 = vadd.f32 0.0, %v479
        %481 = vmatmul.f32.gmra.mxu0 %v438
        %v482 = vpop.f32.mrf.mxu0
        %v483 = vadd.f32 0.0, %v482
        %484 = vmatmul.f32.gmra.mxu0 %v441
        %v485 = vpop.f32.mrf.mxu0
        %v486 = vadd.f32 0.0, %v485
        %487 = vdwg.mxu0
        %v488 = vmul.f32 %v241, %v346
        %v489 = vmul.f32 %v244, %v356
        %v490 = vmul.f32 %v247, %v366
        %v491 = vmul.f32 %v250, %v376
        %v492 = vmul.f32 %v253, %v386
        %v493 = vmul.f32 %v256, %v396
        %v494 = vmul.f32 %v259, %v406
        %v495 = vmul.f32 %v262, %v416
        %v496 = vsub.f32 0.0, %v488
        %v497 = vsub.f32 0.0, %v489
        %v498 = vsub.f32 0.0, %v490
        %v499 = vsub.f32 0.0, %v491
        %v500 = vsub.f32 0.0, %v492
        %v501 = vsub.f32 0.0, %v493
        %v502 = vsub.f32 0.0, %v494
        %v503 = vsub.f32 0.0, %v495
        %v504 = vld [vmem:[%s3] sm:$0x1]
        %v506 = vperm.slane %v504, 0
        %v509 = vsel %vm418, %v496, 0
        %v512 = vsel %vm418, %v497, 0
        %v515 = vsel %vm418, %v498, 0
        %v518 = vsel %vm418, %v499, 0
        %v521 = vsel %vm418, %v500, 0
        %v524 = vsel %vm418, %v501, 0
        %v527 = vsel %vm418, %v502, 0
        %v530 = vsel %vm418, %v503, 0
        %532 = vmatpush.msra.mxu0 0.0
        %533 = vmatpush.msra.mxu0 0.0
        %534 = vmatpush.msra.mxu0 0.0
        %535 = vmatpush.msra.mxu0 0.0
        %536 = vmatpush.msra.mxu0 0.0
        %537 = vmatpush.msra.mxu0 0.0
        %538 = vmatpush.msra.mxu0 0.0
        %539 = vmatpush.msra.mxu0 0.0
        %540 = vmatpush.msra.mxu0 0.0
        %541 = vmatpush.msra.mxu0 0.0
        %542 = vmatpush.msra.mxu0 0.0
        %543 = vmatpush.msra.mxu0 0.0
        %544 = vmatpush.msra.mxu0 0.0
        %545 = vmatpush.msra.mxu0 0.0
        %546 = vmatpush.msra.mxu0 0.0
        %547 = vmatpush.msra.mxu0 %v445
        %548 = vmatmul.f32.gmra.mxu0 %v509
        %v549 = vpop.f32.mrf.mxu0
        %v550 = vadd.f32 %v506, %v549
        %551 = vmatmul.f32.gmra.mxu0 %v512
        %v552 = vpop.f32.mrf.mxu0
        %v553 = vadd.f32 %v506, %v552
        %554 = vmatmul.f32.gmra.mxu0 %v515
        %v555 = vpop.f32.mrf.mxu0
        %v556 = vadd.f32 %v506, %v555
        %557 = vmatmul.f32.gmra.mxu0 %v518
        %v558 = vpop.f32.mrf.mxu0
        %v559 = vadd.f32 %v506, %v558
        %560 = vmatmul.f32.gmra.mxu0 %v521
        %v561 = vpop.f32.mrf.mxu0
        %v562 = vadd.f32 %v506, %v561
        %563 = vmatmul.f32.gmra.mxu0 %v524
        %v564 = vpop.f32.mrf.mxu0
        %v565 = vadd.f32 %v506, %v564
        %566 = vmatmul.f32.gmra.mxu0 %v527
        %v567 = vpop.f32.mrf.mxu0
        %v568 = vadd.f32 %v506, %v567
        %569 = vmatmul.f32.gmra.mxu0 %v530
        %v570 = vpop.f32.mrf.mxu0
        %v571 = vadd.f32 %v506, %v570
        %572 = vdwg.mxu0
        %v573 = vmul.f32 %v199, %v465
        %v574 = vmul.f32 %v200, %v468
        %v575 = vmul.f32 %v201, %v471
        %v576 = vmul.f32 %v202, %v474
        %v577 = vmul.f32 %v203, %v477
        %v578 = vmul.f32 %v204, %v480
        %v579 = vmul.f32 %v205, %v483
        %v580 = vmul.f32 %v206, %v486
        %v581 = vadd.f32 %v573, %v550
        %v582 = vadd.f32 %v574, %v553
        %v583 = vadd.f32 %v575, %v556
        %v584 = vadd.f32 %v576, %v559
        %v585 = vadd.f32 %v577, %v562
        %v586 = vadd.f32 %v578, %v565
        %v587 = vadd.f32 %v579, %v568
        %v588 = vadd.f32 %v580, %v571
        %589 = vst [vmem:[%s191] sm:$0xff] %v581
        %590 = vst [vmem:[%s191 + $0x8] sm:$0xff] %v582
        %591 = vst [vmem:[%s191 + $0x10] sm:$0xff] %v583
        %592 = vst [vmem:[%s191 + $0x18] sm:$0xff] %v584
        %593 = vst [vmem:[%s191 + $0x20] sm:$0xff] %v585
        %594 = vst [vmem:[%s191 + $0x28] sm:$0xff] %v586
        %595 = vst [vmem:[%s191 + $0x30] sm:$0xff] %v587
        %596 = vst [vmem:[%s191 + $0x38] sm:$0xff] %v588
        %s597 = sand.u32 %s115, 1
        %s598 = scalar_lea.sflag [#allocation3], %s597
        %s599 = sand.u32 %s115, 1
        %s600 = smul.addr %s599, 64
        %s601 = scalar_lea.vmem [#allocation2], %s600
        // Predicated region
        $region37: #{tpu_custom_call.1} parent=35 // pred_check
          %p602 = pneg %p125
        $region38: #{tpu_custom_call.1} parent=35 // pred_check_branch
          %604 = sbr.rel (%p602) target = $region40
        $region39: #{tpu_custom_call.1} parent=35 // pred_region
          %s605 = smul.u32 8, %s18
          %607 = vsyncadd %s598, 0
          %s608 = smul.addr %s605, 8
          %s609 = scalar_lea.hbm %s4, %s608
          %s610 = sshll.u32 %s601, 4
          %s611 = int_to_ptr.vmem [resolvable:$true] %s610
          %s612 = sshll.u32 %s609, 4
          %s613 = int_to_ptr.hbm [resolvable:$true] %s612
          %618 = dma.vmem_to_hbm [thread:$0]  %s611, 1024, %s613, %s598, 128, 128, 8
        $region40: #{tpu_custom_call.1} parent=35 // pred_fallthru
          _
      $region36: #{tpu_custom_call.1} parent=5 // pred_fallthru
        _
      %p619 = scmp.le.s32.totalorder 2, %s13
      // Predicated region
      $region41: #{tpu_custom_call.1} parent=5 // pred_check
        %p620 = pneg %p619
      $region42: #{tpu_custom_call.1} parent=5 // pred_check_branch
        %622 = sbr.rel (%p620) target = $region44
      $region43: #{tpu_custom_call.1} parent=5 // pred_region
        %s623 = ssub.s32 %s13, 2
        // Predicated region
        $region45: #{tpu_custom_call.1} parent=43 // pred_check
          %p624 = pneg %p131
        $region46: #{tpu_custom_call.1} parent=43 // pred_check_branch
          %626 = sbr.rel (%p624) target = $region48
        $region47: #{tpu_custom_call.1} parent=43 // pred_region
          %s627 = sand.u32 %s116, 1
          %s628 = scalar_lea.sflag [#allocation3], %s627
          %s629 = sand.u32 %s116, 1
          %s630 = smul.addr %s629, 64
          %s631 = scalar_lea.vmem [#allocation2], %s630
          %633 = dma.done %s628, 1024
        $region48: #{tpu_custom_call.1} parent=43 // pred_fallthru
          _
      $region44: #{tpu_custom_call.1} parent=5 // pred_fallthru
        _
    $region6: #{tpu_custom_call.1} parent=1 // loop_footer
      %s17 = sadd.s32 1, %s13
    $region7: #{tpu_custom_call.1} parent=1 // loop_footer_branch
      %12 = sbr.rel target = $region3
    $region8: #{tpu_custom_call.1} parent=1 // loop_exit
      _
    %634 = vsyncpa [#allocation3], 1
    %s635 = scalar_lea.sflag [#allocation3], 1
    %636 = vsyncpa %s635, 1

</llo_original>
